<compile_context>
chip_gen: v7x
topology: tpu7x:2x2x1
jax: 0.10.0
libtpu: 0.0.40
codegen_flags: <defaults>
</compile_context>

<pallas_src>
import jax
import jax.numpy as jnp
from jax.experimental import pallas as pl
from jax.experimental.pallas import tpu as pltpu


# ----------------------------------------------------------------------------- kernel


def _poisson_decoder_kernel(z_ref,
                            w1_ref, b1_ref,
                            w2_ref, b2_ref,
                            w3_ref, b3_ref,
                            w4_ref, b4_ref,
                            rate_ref):
    # MXU inputs in w1's dtype (bf16 by default), f32 accumulate, f32 VPU/EUP epilogue.
    mm_dtype = w1_ref.dtype
    x = z_ref[...].astype(mm_dtype)                                      # in-kernel cast
    h = jnp.dot(x, w1_ref[...], preferred_element_type=jnp.float32) + b1_ref[...]
    h = jnp.maximum(h, 0.0)                                              # relu (f32)
    h = jnp.dot(h.astype(mm_dtype), w2_ref[...],
                preferred_element_type=jnp.float32) + b2_ref[...]
    h = jnp.maximum(h, 0.0)
    h = jnp.dot(h.astype(mm_dtype), w3_ref[...],
                preferred_element_type=jnp.float32) + b3_ref[...]
    h = jnp.maximum(h, 0.0)
    # fc4 stays f32: exp() amplifies logit error, and this matmul is tiny (K=32, N=128).
    logits = jnp.dot(h, w4_ref[...].astype(jnp.float32),
                     preferred_element_type=jnp.float32) + b4_ref[...]
    # NOTE: for a ragged last block the tail rows of z are unspecified, so exp() here
    # may be inf/NaN on those rows; they are masked on writeback and never returned.
    rate_ref[...] = jnp.exp(logits).astype(rate_ref.dtype)               # Poisson rate


# --------------------------------------------------------------------------- heuristics


def _round_up(x, m):
    return ((x + m - 1) // m) * m


def _tensorcores_per_chip():
    """Best-effort TC-per-chip count: 2 on megacore-style chips (v7x/v5p/v4/...), else 1.
    Conservative default is 1 (no forced grid split)."""
    try:
        kind = jax.devices()[0].device_kind.lower()
    except Exception:
        return 1
    if "lite" in kind or "v5e" in kind or "v6e" in kind:
        return 1
    for tag in ("v7", "7x", "v5p", "v4", "v3", "v2"):
        if tag in kind:
            return 2
    return 1


def _choose_batch_tile(batch, requested, num_tc):
    """Batch tile: multiple of 8, <= batch.  Only force a >=2-step grid on 2-TC chips
    (v7x megacore); on 1-TC chips (v5e/v6e) the grid is a serial loop and splitting a
    single-tile batch is pure per-step overhead."""
    tile = max(8, _round_up(min(requested, batch), 8))
    if num_tc >= 2 and batch >= 16 and pl.cdiv(batch, tile) < 2:
        tile = max(8, _round_up(pl.cdiv(batch, 2), 8))
    return tile


def _estimate_vmem_bytes(tile, latent, h1, h2, h3, out_dim, mm_bytes, out_bytes):
    """Rough, generous working-set estimate: double-buffered I/O tiles, resident
    (possibly double-buffered) weights/biases, and f32 + bf16 layer temporaries."""
    dbuf_in = 2 * tile * latent * 4                     # z stays f32 in HBM/VMEM
    dbuf_out = 2 * tile * out_dim * out_bytes
    weights = 2 * ((latent * h1 + h1 * h2 + h2 * h3) * mm_bytes
                   + h3 * out_dim * 4
                   + (h1 + h2 + h3 + out_dim) * 4)
    temps = tile * (h1 + h2 + h3) * (4 + mm_bytes) + tile * out_dim * 4
    return dbuf_in + dbuf_out + weights + temps + (1 << 20)


# ----------------------------------------------------------------------------- wrapper


def prepare_params(params, matmul_dtype=jnp.bfloat16):
    """One-time parameter prep (do this at model init, not per forward):
    fc1-fc3 weights -> matmul_dtype (MXU inputs), fc4 weight kept f32, all biases
    reshaped to (1, F) f32 rows for 2D VMEM tiles."""
    (w1, b1), (w2, b2), (w3, b3), (w4, b4) = params
    return (
        w1.astype(matmul_dtype), b1.reshape(1, -1).astype(jnp.float32),
        w2.astype(matmul_dtype), b2.reshape(1, -1).astype(jnp.float32),
        w3.astype(matmul_dtype), b3.reshape(1, -1).astype(jnp.float32),
        w4.astype(jnp.float32), b4.reshape(1, -1).astype(jnp.float32),
    )


def poisson_decoder_decode(z, prepared_params, *, batch_tile=4096,
                           out_dtype=jnp.float32):
    """Fused MLP forward.  z: (B, latent_dim) f32 -> Poisson rate: (B, output_dim).

    prepared_params: output of prepare_params().  out_dtype=jnp.bfloat16 halves the
    output writeback (the dominant HBM traffic) if downstream tolerates bf16 rates.
    """
    w1, b1, w2, b2, w3, b3, w4, b4 = prepared_params
    B, latent = z.shape
    h1, h2, h3, out_dim = w1.shape[1], w2.shape[1], w3.shape[1], w4.shape[1]
    mm_bytes = jnp.dtype(w1.dtype).itemsize
    out_bytes = jnp.dtype(out_dtype).itemsize

    tile = _choose_batch_tile(B, batch_tile, _tensorcores_per_chip())
    # Keep the estimated working set under ~45 MiB (headroom inside v7x's 64 MiB
    # physical VMEM; far inside v5e/v6e's 128 MiB once the scoped limit is raised).
    while tile > 8 and _estimate_vmem_bytes(
            tile, latent, h1, h2, h3, out_dim, mm_bytes, out_bytes) > (45 << 20):
        tile = max(8, _round_up(tile // 2, 8))
    grid = pl.cdiv(B, tile)

    est = _estimate_vmem_bytes(tile, latent, h1, h2, h3, out_dim, mm_bytes, out_bytes)
    # v5e's scoped-VMEM default is only 16 MiB; raise it explicitly (cap below v7x's
    # 64 MiB physical) so large tiles compile on every generation.
    vmem_limit = int(min(max(int(1.25 * est), 32 << 20), 48 << 20))

    # Weights/biases are grid-invariant (constant index_map) and tiny, so they stay
    # resident in VMEM across all batch tiles.
    full = lambda shape: pl.BlockSpec(shape, lambda i: (0, 0))

    # Ragged batches: out_shape is exactly (B, out_dim); the partial boundary block is
    # masked on writeback, so no explicit pad of z or slice of the output is needed.
    rate = pl.pallas_call(
        _poisson_decoder_kernel,
        out_shape=jax.ShapeDtypeStruct((B, out_dim), out_dtype),
        grid_spec=pltpu.PrefetchScalarGridSpec(
            num_scalar_prefetch=0,
            grid=(grid,),
            in_specs=[
                pl.BlockSpec((tile, latent), lambda i: (i, 0)),  # z tile (f32)
                full((latent, h1)), full((1, h1)),               # fc1
                full((h1, h2)), full((1, h2)),                   # fc2
                full((h2, h3)), full((1, h3)),                   # fc3
                full((h3, out_dim)), full((1, out_dim)),         # fc4_out (f32)
            ],
            out_specs=pl.BlockSpec((tile, out_dim), lambda i: (i, 0)),
        ),
        compiler_params=pltpu.CompilerParams(
            dimension_semantics=("parallel",),
            vmem_limit_bytes=vmem_limit),
    )(z, w1, b1, w2, b2, w3, b3, w4, b4)

    return rate


# --------------------------------------------------------------------- reference / test


def init_linear(key, in_dim, out_dim):
    """Deterministic init mimicking nn.Linear defaults (uniform +/- 1/sqrt(fan_in))."""
    kw, kb = jax.random.split(key)
    bound = 1.0 / jnp.sqrt(jnp.float32(in_dim))
    # Stored as (in, out) so forward is x @ W + b.
    w = jax.random.uniform(kw, (in_dim, out_dim), jnp.float32, -bound, bound)
    b = jax.random.uniform(kb, (out_dim,), jnp.float32, -bound, bound)
    return w, b


def reference_decode(z, params, matmul_dtype=None):
    """Plain-JAX reference.  matmul_dtype=None -> pure f32; bf16 -> same mixed
    precision as the kernel (bf16 MXU inputs for fc1-fc3, f32 fc4, f32 epilogue)."""
    x = z
    n = len(params)
    for i, (w, b) in enumerate(params):
        last = i == n - 1
        if matmul_dtype is not None and not last:
            y = jnp.dot(x.astype(matmul_dtype), w.astype(matmul_dtype),
                        preferred_element_type=jnp.float32)
        else:
            y = jnp.dot(x.astype(jnp.float32), w.astype(jnp.float32),
                        preferred_element_type=jnp.float32)
        x = y + b
        if not last:
            x = jnp.maximum(x, 0.0)
    return jnp.exp(x)


if __name__ == "__main__":
    # Shapes consistent with the module: PoissonDecoder(latent_dim=32,
    # layers_dims=[64, 64, 32], output_dim=128).
    latent_dim = 32
    layers_dims = [64, 64, 32]
    output_dim = 128

    key = jax.random.PRNGKey(0)
    k_z1, k_z2, k1, k2, k3, k4 = jax.random.split(key, 6)

    params = [
        init_linear(k1, latent_dim, layers_dims[0]),
        init_linear(k2, layers_dims[0], layers_dims[1]),
        init_linear(k3, layers_dims[1], layers_dims[2]),
        init_linear(k4, layers_dims[2], output_dim),
    ]
    prepared = prepare_params(params)   # one-time cast/reshape, not per forward

    # Two cases: a tiny batch (single grid step) and a non-tile-aligned batch that
    # exercises the ragged (masked) boundary block and, on v7x, a >=2-step grid.
    for name, zkey, batch in (("small", k_z1, 8), ("ragged", k_z2, 300)):
        z_sample = jax.random.normal(zkey, (batch, latent_dim), jnp.float32)

        rate = jax.block_until_ready(poisson_decoder_decode(z_sample, prepared))
        assert rate.shape == (batch, output_dim)
        assert rate.dtype == jnp.float32

        ref_mixed = reference_decode(z_sample, params, matmul_dtype=jnp.bfloat16)
        ref_f32 = reference_decode(z_sample, params)
        assert bool(jnp.all(jnp.isfinite(rate))), f"{name}: non-finite rate"
        assert jnp.allclose(rate, ref_mixed, rtol=2e-3, atol=1e-5), (
            f"{name}: mismatch vs mixed-precision reference")
        assert jnp.allclose(rate, ref_f32, rtol=5e-2, atol=1e-4), (
            f"{name}: mismatch vs f32 reference")
        assert bool(jnp.all(rate > 0)), f"{name}: Poisson rate must be positive"

    print("KERNEL_OK")
</pallas_src>

<mosaic_0001>
module attributes {stable_mosaic.version = 11 : i64} {
  func.func @_poisson_decoder_kernel(%arg0: i32, %arg1: memref<8x32xf32, #tpu.memory_space<vmem>>, %arg2: memref<32x64xbf16, #tpu.memory_space<vmem>>, %arg3: memref<1x64xf32, #tpu.memory_space<vmem>>, %arg4: memref<64x64xbf16, #tpu.memory_space<vmem>>, %arg5: memref<1x64xf32, #tpu.memory_space<vmem>>, %arg6: memref<64x32xbf16, #tpu.memory_space<vmem>>, %arg7: memref<1x32xf32, #tpu.memory_space<vmem>>, %arg8: memref<32x128xf32, #tpu.memory_space<vmem>>, %arg9: memref<1x128xf32, #tpu.memory_space<vmem>>, %arg10: memref<8x128xf32, #tpu.memory_space<vmem>>) attributes {dimension_semantics = [#tpu.dimension_semantics<parallel>], iteration_bounds = array<i64: 1>, scalar_prefetch = 0 : i64, scratch_operands = 0 : i64, tpu.core_type = #tpu.core_type<tc>, window_params = [{transform_indices = @transform_0, window_bounds = array<i64: 8, 32>}, {pipeline_mode = #tpu.pipeline_mode<synchronous>, transform_indices = @transform_1, window_bounds = array<i64: 32, 64>}, {pipeline_mode = #tpu.pipeline_mode<synchronous>, transform_indices = @transform_2, window_bounds = array<i64: 1, 64>}, {pipeline_mode = #tpu.pipeline_mode<synchronous>, transform_indices = @transform_3, window_bounds = array<i64: 64, 64>}, {pipeline_mode = #tpu.pipeline_mode<synchronous>, transform_indices = @transform_4, window_bounds = array<i64: 1, 64>}, {pipeline_mode = #tpu.pipeline_mode<synchronous>, transform_indices = @transform_5, window_bounds = array<i64: 64, 32>}, {pipeline_mode = #tpu.pipeline_mode<synchronous>, transform_indices = @transform_6, window_bounds = array<i64: 1, 32>}, {pipeline_mode = #tpu.pipeline_mode<synchronous>, transform_indices = @transform_7, window_bounds = array<i64: 32, 128>}, {pipeline_mode = #tpu.pipeline_mode<synchronous>, transform_indices = @transform_8, window_bounds = array<i64: 1, 128>}, {transform_indices = @transform_9, window_bounds = array<i64: 8, 128>}]} {
    %c0 = arith.constant 0 : index
    %c0_0 = arith.constant 0 : index
    %0 = vector.load %arg1[%c0, %c0_0] : memref<8x32xf32, #tpu.memory_space<vmem>>, vector<8x32xf32>
    %1 = arith.truncf %0 : vector<8x32xf32> to vector<8x32xbf16>
    %c0_1 = arith.constant 0 : index
    %c0_2 = arith.constant 0 : index
    %2 = vector.load %arg2[%c0_1, %c0_2] : memref<32x64xbf16, #tpu.memory_space<vmem>>, vector<32x64xbf16>
    %cst = arith.constant dense<0.000000e+00> : vector<8x64xf32>
    %3 = tpu.matmul %1, %2, %cst {dimension_numbers = #tpu.dot_dimension_numbers<[1], [0], [0], [1], [0, 0, 1, 1], [], []>} : vector<8x32xbf16>, vector<32x64xbf16>, vector<8x64xf32> -> vector<8x64xf32>
    %c0_3 = arith.constant 0 : index
    %c0_4 = arith.constant 0 : index
    %4 = vector.load %arg3[%c0_3, %c0_4] : memref<1x64xf32, #tpu.memory_space<vmem>>, vector<1x64xf32>
    %5 = vector.broadcast %4 : vector<1x64xf32> to vector<8x64xf32>
    %6 = arith.addf %3, %5 : vector<8x64xf32>
    %cst_5 = arith.constant 0.000000e+00 : f32
    %7 = vector.broadcast %cst_5 : f32 to vector<8x64xf32>
    %8 = arith.maximumf %6, %7 : vector<8x64xf32>
    %9 = arith.truncf %8 : vector<8x64xf32> to vector<8x64xbf16>
    %c0_6 = arith.constant 0 : index
    %c0_7 = arith.constant 0 : index
    %10 = vector.load %arg4[%c0_6, %c0_7] : memref<64x64xbf16, #tpu.memory_space<vmem>>, vector<64x64xbf16>
    %cst_8 = arith.constant dense<0.000000e+00> : vector<8x64xf32>
    %11 = tpu.matmul %9, %10, %cst_8 {dimension_numbers = #tpu.dot_dimension_numbers<[1], [0], [0], [1], [0, 0, 1, 1], [], []>} : vector<8x64xbf16>, vector<64x64xbf16>, vector<8x64xf32> -> vector<8x64xf32>
    %c0_9 = arith.constant 0 : index
    %c0_10 = arith.constant 0 : index
    %12 = vector.load %arg5[%c0_9, %c0_10] : memref<1x64xf32, #tpu.memory_space<vmem>>, vector<1x64xf32>
    %13 = vector.broadcast %12 : vector<1x64xf32> to vector<8x64xf32>
    %14 = arith.addf %11, %13 : vector<8x64xf32>
    %cst_11 = arith.constant 0.000000e+00 : f32
    %15 = vector.broadcast %cst_11 : f32 to vector<8x64xf32>
    %16 = arith.maximumf %14, %15 : vector<8x64xf32>
    %17 = arith.truncf %16 : vector<8x64xf32> to vector<8x64xbf16>
    %c0_12 = arith.constant 0 : index
    %c0_13 = arith.constant 0 : index
    %18 = vector.load %arg6[%c0_12, %c0_13] : memref<64x32xbf16, #tpu.memory_space<vmem>>, vector<64x32xbf16>
    %cst_14 = arith.constant dense<0.000000e+00> : vector<8x32xf32>
    %19 = tpu.matmul %17, %18, %cst_14 {dimension_numbers = #tpu.dot_dimension_numbers<[1], [0], [0], [1], [0, 0, 1, 1], [], []>} : vector<8x64xbf16>, vector<64x32xbf16>, vector<8x32xf32> -> vector<8x32xf32>
    %c0_15 = arith.constant 0 : index
    %c0_16 = arith.constant 0 : index
    %20 = vector.load %arg7[%c0_15, %c0_16] : memref<1x32xf32, #tpu.memory_space<vmem>>, vector<1x32xf32>
    %21 = vector.broadcast %20 : vector<1x32xf32> to vector<8x32xf32>
    %22 = arith.addf %19, %21 : vector<8x32xf32>
    %cst_17 = arith.constant 0.000000e+00 : f32
    %23 = vector.broadcast %cst_17 : f32 to vector<8x32xf32>
    %24 = arith.maximumf %22, %23 : vector<8x32xf32>
    %c0_18 = arith.constant 0 : index
    %c0_19 = arith.constant 0 : index
    %25 = vector.load %arg8[%c0_18, %c0_19] : memref<32x128xf32, #tpu.memory_space<vmem>>, vector<32x128xf32>
    %cst_20 = arith.constant dense<0.000000e+00> : vector<8x128xf32>
    %26 = tpu.matmul %24, %25, %cst_20 {dimension_numbers = #tpu.dot_dimension_numbers<[1], [0], [0], [1], [0, 0, 1, 1], [], []>} : vector<8x32xf32>, vector<32x128xf32>, vector<8x128xf32> -> vector<8x128xf32>
    %c0_21 = arith.constant 0 : index
    %c0_22 = arith.constant 0 : index
    %27 = vector.load %arg9[%c0_21, %c0_22] : memref<1x128xf32, #tpu.memory_space<vmem>>, vector<1x128xf32>
    %28 = vector.broadcast %27 : vector<1x128xf32> to vector<8x128xf32>
    %29 = arith.addf %26, %28 : vector<8x128xf32>
    %30 = math.exp %29 : vector<8x128xf32>
    %c0_23 = arith.constant 0 : index
    %c0_24 = arith.constant 0 : index
    %31 = vector.load %arg10[%c0_23, %c0_24] : memref<8x128xf32, #tpu.memory_space<vmem>>, vector<8x128xf32>
    tpu.vector_store %arg10[%c0_23, %c0_24], %30 {strides = array<i32>} : memref<8x128xf32, #tpu.memory_space<vmem>>, vector<8x128xf32>,
    return
  }
  func.func @transform_0(%arg0: i32) -> (i32, i32) {
    %c0_i32 = arith.constant 0 : i32
    %c0_i32_0 = arith.constant 0 : i32
    return %arg0, %c0_i32 : i32, i32
  }
  func.func @transform_1(%arg0: i32) -> (i32, i32) {
    %c0_i32 = arith.constant 0 : i32
    %c0_i32_0 = arith.constant 0 : i32
    %c0_i32_1 = arith.constant 0 : i32
    return %c0_i32, %c0_i32_0 : i32, i32
  }
  func.func @transform_2(%arg0: i32) -> (i32, i32) {
    %c0_i32 = arith.constant 0 : i32
    %c0_i32_0 = arith.constant 0 : i32
    %c0_i32_1 = arith.constant 0 : i32
    return %c0_i32, %c0_i32_0 : i32, i32
  }
  func.func @transform_3(%arg0: i32) -> (i32, i32) {
    %c0_i32 = arith.constant 0 : i32
    %c0_i32_0 = arith.constant 0 : i32
    %c0_i32_1 = arith.constant 0 : i32
    return %c0_i32, %c0_i32_0 : i32, i32
  }
  func.func @transform_4(%arg0: i32) -> (i32, i32) {
    %c0_i32 = arith.constant 0 : i32
    %c0_i32_0 = arith.constant 0 : i32
    %c0_i32_1 = arith.constant 0 : i32
    return %c0_i32, %c0_i32_0 : i32, i32
  }
  func.func @transform_5(%arg0: i32) -> (i32, i32) {
    %c0_i32 = arith.constant 0 : i32
    %c0_i32_0 = arith.constant 0 : i32
    %c0_i32_1 = arith.constant 0 : i32
    return %c0_i32, %c0_i32_0 : i32, i32
  }
  func.func @transform_6(%arg0: i32) -> (i32, i32) {
    %c0_i32 = arith.constant 0 : i32
    %c0_i32_0 = arith.constant 0 : i32
    %c0_i32_1 = arith.constant 0 : i32
    return %c0_i32, %c0_i32_0 : i32, i32
  }
  func.func @transform_7(%arg0: i32) -> (i32, i32) {
    %c0_i32 = arith.constant 0 : i32
    %c0_i32_0 = arith.constant 0 : i32
    %c0_i32_1 = arith.constant 0 : i32
    return %c0_i32, %c0_i32_0 : i32, i32
  }
  func.func @transform_8(%arg0: i32) -> (i32, i32) {
    %c0_i32 = arith.constant 0 : i32
    %c0_i32_0 = arith.constant 0 : i32
    %c0_i32_1 = arith.constant 0 : i32
    return %c0_i32, %c0_i32_0 : i32, i32
  }
  func.func @transform_9(%arg0: i32) -> (i32, i32) {
    %c0_i32 = arith.constant 0 : i32
    %c0_i32_0 = arith.constant 0 : i32
    return %arg0, %c0_i32 : i32, i32
  }
}

</mosaic_0001>

<llo_original>
// kernel: tpu_custom_call.1
$region0: #{tpu_custom_call.1}
  #allocation0 [shape = 'u32[]', space=smem, size = 0x4, offset = 0x4, fixed_abs, tag = 'smem constant byte address 0x4 - core index']
  #allocation1 [shape = 'u32[144,128]{1,0:T(1,128)}', space=vmem, size = 0x12000, scoped, tag = 'internal scratch']
  %s0 = inlined_call_operand.hbm [shape: f32[8,32], index: 0, kind: input, shape index: {}]
  %s1 = inlined_call_operand.hbm [shape: bf16[32,64], index: 1, kind: input, shape index: {}]
  %s2 = inlined_call_operand.vmem [shape: f32[1,64], index: 2, kind: input, shape index: {}]
  %s3 = inlined_call_operand.vmem [shape: bf16[64,64], index: 3, kind: input, shape index: {}]
  %s4 = inlined_call_operand.vmem [shape: f32[1,64], index: 4, kind: input, shape index: {}]
  %s5 = inlined_call_operand.vmem [shape: bf16[64,32], index: 5, kind: input, shape index: {}]
  %s6 = inlined_call_operand.vmem [shape: f32[1,32], index: 6, kind: input, shape index: {}]
  %s7 = inlined_call_operand.vmem [shape: f32[32,128], index: 7, kind: input, shape index: {}]
  %s8 = inlined_call_operand.vmem [shape: f32[1,128], index: 8, kind: input, shape index: {}]
  %s9 = inlined_call_operand.hbm [shape: f32[8,128], index: 9, kind: output, shape index: {}]
  %s10 = sld [smem:[#allocation0]]
  $region54: #{tpu_custom_call.1} parent=0
    _
  %s12 = ssub.s32 1, %s10
  %s13 = scalar_select 0, %s12, %s10
  $region1: #{tpu_custom_call.1} parent=0
    #allocation2 [shape = 'u8[4096]{0}', space=vmem, size = 0x1000, scoped, tag = 'input window, operand 0, single buffered']
    #allocation3 [shape = 's32[1]{0}', space=sflag, size = 0x4, scoped, tag = 'scoped memory for tpu_custom_call.1']
    #allocation4 [shape = 's32[1]{0}', space=sflag, size = 0x4, scoped, tag = 'scoped memory for tpu_custom_call.1']
    #allocation5 [shape = 'u8[8192]{0}', space=vmem, size = 0x2000, scoped, tag = 'input window, operand 1, single buffered']
    #allocation6 [shape = 's32[1]{0}', space=sflag, size = 0x4, scoped, tag = 'scoped memory for tpu_custom_call.1']
    #allocation7 [shape = 'u8[4096]{0}', space=vmem, size = 0x1000, scoped, tag = 'output window, operand 0, single buffered']
    %14 = vsyncpa [#allocation3], 0
    %15 = vsyncpa [#allocation6], 0
    %16 = vsyncpa [#allocation4], 0
    // Predicated region
    $region2: #{tpu_custom_call.1} parent=1 // pred_check
      _
    $region3: #{tpu_custom_call.1} parent=1 // pred_check_branch
      %18 = sbr.rel (0) target = $region5
    $region4: #{tpu_custom_call.1} parent=1 // pred_region
      %s20 = ssub.s32 128, 128
      %21 = vsyncadd [#allocation3], %s20
      %s23 = sshll.u32 [#allocation2], 4
      %s24 = int_to_ptr.vmem [resolvable:$true] %s23
      %26 = dma.hbm_to_vmem [thread:$0]  %s0, 128, %s24, [#allocation3]
    $region5: #{tpu_custom_call.1} parent=1 // pred_fallthru
      _
    // Predicated region
    $region6: #{tpu_custom_call.1} parent=1 // pred_check
      _
    $region7: #{tpu_custom_call.1} parent=1 // pred_check_branch
      %28 = sbr.rel (0) target = $region9
    $region8: #{tpu_custom_call.1} parent=1 // pred_region
      %s30 = ssub.s32 256, 256
      %31 = vsyncadd [#allocation6], %s30
      %s32 = sshll.u32 [#allocation5], 4
      %s33 = int_to_ptr.vmem [resolvable:$true] %s32
      %38 = dma.hbm_to_vmem [thread:$0]  %s1, 256, %s33, [#allocation6], 64, 64, 4
    $region9: #{tpu_custom_call.1} parent=1 // pred_fallthru
      _
    // Predicated region
    $region10: #{tpu_custom_call.1} parent=1 // pred_check
      _
    $region11: #{tpu_custom_call.1} parent=1 // pred_check_branch
      %40 = sbr.rel (0) target = $region13
    $region12: #{tpu_custom_call.1} parent=1 // pred_region
      _
    $region13: #{tpu_custom_call.1} parent=1 // pred_fallthru
      _
    // Predicated region
    $region14: #{tpu_custom_call.1} parent=1 // pred_check
      _
    $region15: #{tpu_custom_call.1} parent=1 // pred_check_branch
      %42 = sbr.rel (0) target = $region17
    $region16: #{tpu_custom_call.1} parent=1 // pred_region
      _
    $region17: #{tpu_custom_call.1} parent=1 // pred_fallthru
      _
    // Predicated region
    $region18: #{tpu_custom_call.1} parent=1 // pred_check
      _
    $region19: #{tpu_custom_call.1} parent=1 // pred_check_branch
      %44 = sbr.rel (0) target = $region21
    $region20: #{tpu_custom_call.1} parent=1 // pred_region
      _
    $region21: #{tpu_custom_call.1} parent=1 // pred_fallthru
      _
    // Predicated region
    $region22: #{tpu_custom_call.1} parent=1 // pred_check
      _
    $region23: #{tpu_custom_call.1} parent=1 // pred_check_branch
      %46 = sbr.rel (0) target = $region25
    $region24: #{tpu_custom_call.1} parent=1 // pred_region
      _
    $region25: #{tpu_custom_call.1} parent=1 // pred_fallthru
      _
    // Predicated region
    $region26: #{tpu_custom_call.1} parent=1 // pred_check
      _
    $region27: #{tpu_custom_call.1} parent=1 // pred_check_branch
      %48 = sbr.rel (0) target = $region29
    $region28: #{tpu_custom_call.1} parent=1 // pred_region
      _
    $region29: #{tpu_custom_call.1} parent=1 // pred_fallthru
      _
    // Predicated region
    $region30: #{tpu_custom_call.1} parent=1 // pred_check
      _
    $region31: #{tpu_custom_call.1} parent=1 // pred_check_branch
      %50 = sbr.rel (0) target = $region33
    $region32: #{tpu_custom_call.1} parent=1 // pred_region
      _
    $region33: #{tpu_custom_call.1} parent=1 // pred_fallthru
      _
    // Predicated region
    $region34: #{tpu_custom_call.1} parent=1 // pred_check
      _
    $region35: #{tpu_custom_call.1} parent=1 // pred_check_branch
      %52 = sbr.rel (0) target = $region37
    $region36: #{tpu_custom_call.1} parent=1 // pred_region
      _
    $region37: #{tpu_custom_call.1} parent=1 // pred_fallthru
      _
    // Predicated region
    $region38: #{tpu_custom_call.1} parent=1 // pred_check
      _
    $region39: #{tpu_custom_call.1} parent=1 // pred_check_branch
      %54 = sbr.rel (0) target = $region41
    $region40: #{tpu_custom_call.1} parent=1 // pred_region
      %55 = dma.done [#allocation3], 128
    $region41: #{tpu_custom_call.1} parent=1 // pred_fallthru
      _
    // Predicated region
    $region42: #{tpu_custom_call.1} parent=1 // pred_check
      _
    $region43: #{tpu_custom_call.1} parent=1 // pred_check_branch
      %57 = sbr.rel (0) target = $region45
    $region44: #{tpu_custom_call.1} parent=1 // pred_region
      %58 = dma.done [#allocation6], 256
    $region45: #{tpu_custom_call.1} parent=1 // pred_fallthru
      _
    %v60 = vld [vmem:[#allocation2] sm:$0xff]
    %v61 = vpack.c.bf16 %v60, %v60
    %v62 = vld [vmem:[#allocation5] sm:$0xf]
    %v63 = vld [vmem:[#allocation5 + $0x4] sm:$0xf]
    %v64 = vld [vmem:[#allocation5 + $0x8] sm:$0xf]
    %v65 = vld [vmem:[#allocation5 + $0xc] sm:$0xf]
    %v66 = vld [vmem:[%s2] sm:$0x1]
    %v68 = vlaneseq
    %v69 = vshrl.u32 %v68, 7
    %v70 = vsub.s32 0, %v69
    %v71 = vrot.slane %v66, %v70
    %v77 = vunpack.c.l.b16 %v62
    %v78 = vunpack.c.l.b16 %v63
    %v79 = vunpack.c.l.b16 %v64
    %v80 = vunpack.c.l.b16 %v65
    %v81 = vpack.c.b16 %v78, %v77
    %v82 = vpack.c.b16 %v80, %v79
    %vm85 = vcmask 261120
    %v87 = vsel %vm85, %v61, 0
    %89 = vmatprep.subr.bf16.mxu0 0
    %90 = vmatpush1.bf16.msra.mxu0 %v81
    %91 = vmatprep.subr.bf16.mxu0 0
    %92 = vmatpush1.bf16.msra.mxu0 %v82
    %93 = vmatprep.subr.bf16.mxu0 0
    %94 = vmatpush1.bf16.msra.mxu0 0
    %95 = vmatprep.subr.bf16.mxu0 0
    %96 = vmatpush1.bf16.msra.mxu0 0
    %97 = vmatprep.subr.bf16.mxu0 0
    %98 = vmatpush1.bf16.msra.mxu0 0
    %99 = vmatprep.subr.bf16.mxu0 0
    %100 = vmatpush1.bf16.msra.mxu0 0
    %101 = vmatprep.subr.bf16.mxu0 0
    %102 = vmatpush1.bf16.msra.mxu0 0
    %103 = vmatprep.subr.bf16.mxu0 0
    %104 = vmatpush1.bf16.msra.mxu0 0
    %105 = vmatprep.subr.bf16.mxu0 0
    %106 = vmatpush1.bf16.msra.mxu0 0
    %107 = vmatprep.subr.bf16.mxu0 0
    %108 = vmatpush1.bf16.msra.mxu0 0
    %109 = vmatprep.subr.bf16.mxu0 0
    %110 = vmatpush1.bf16.msra.mxu0 0
    %111 = vmatprep.subr.bf16.mxu0 0
    %112 = vmatpush1.bf16.msra.mxu0 0
    %113 = vmatprep.subr.bf16.mxu0 0
    %114 = vmatpush1.bf16.msra.mxu0 0
    %115 = vmatprep.subr.bf16.mxu0 0
    %116 = vmatpush1.bf16.msra.mxu0 0
    %117 = vmatprep.subr.bf16.mxu0 0
    %118 = vmatpush1.bf16.msra.mxu0 0
    %119 = vmatprep.subr.bf16.mxu0 0
    %120 = vmatpush1.bf16.msra.mxu0 0
    %121 = vmatprep.mubr.bf16.mxu0 0
    %122 = vmatmul.mubr.bf16.gmra.mrb[0].mxu0 %v87
    %v123 = vpop.f32.mrb[0].mxu0
    %v124 = vadd.f32 %v71, %v123
    %v125 = vpop.f32.mrb[0].mxu0
    %v126 = vpop.f32.mrb[0].mxu0
    %v127 = vpop.f32.mrb[0].mxu0
    %128 = vdwg.mxu0
    %v129 = vmax.f32 %v124, 0.0
    %v130 = vpack.c.bf16 %v129, %v129
    %v131 = vld [vmem:[%s3] sm:$0xf]
    %v132 = vld [vmem:[%s3 + $0x4] sm:$0xf]
    %v133 = vld [vmem:[%s3 + $0x8] sm:$0xf]
    %v134 = vld [vmem:[%s3 + $0xc] sm:$0xf]
    %v135 = vld [vmem:[%s3 + $0x10] sm:$0xf]
    %v136 = vld [vmem:[%s3 + $0x14] sm:$0xf]
    %v137 = vld [vmem:[%s3 + $0x18] sm:$0xf]
    %v138 = vld [vmem:[%s3 + $0x1c] sm:$0xf]
    %v139 = vld [vmem:[%s4] sm:$0x1]
    %v141 = vlaneseq
    %v142 = vshrl.u32 %v141, 7
    %v143 = vsub.s32 0, %v142
    %v144 = vrot.slane %v139, %v143
    %v154 = vunpack.c.l.b16 %v131
    %v155 = vunpack.c.l.b16 %v132
    %v156 = vunpack.c.l.b16 %v133
    %v157 = vunpack.c.l.b16 %v134
    %v158 = vunpack.c.l.b16 %v135
    %v159 = vunpack.c.l.b16 %v136
    %v160 = vunpack.c.l.b16 %v137
    %v161 = vunpack.c.l.b16 %v138
    %v162 = vpack.c.b16 %v155, %v154
    %v163 = vpack.c.b16 %v157, %v156
    %v164 = vpack.c.b16 %v159, %v158
    %v165 = vpack.c.b16 %v161, %v160
    %vm170 = vcmask 523264
    %v172 = vsel %vm170, %v130, 0
    %174 = vmatprep.subr.bf16.mxu0 0
    %175 = vmatpush1.bf16.msra.mxu0 %v162
    %176 = vmatprep.subr.bf16.mxu0 0
    %177 = vmatpush1.bf16.msra.mxu0 %v163
    %178 = vmatprep.subr.bf16.mxu0 0
    %179 = vmatpush1.bf16.msra.mxu0 %v164
    %180 = vmatprep.subr.bf16.mxu0 0
    %181 = vmatpush1.bf16.msra.mxu0 %v165
    %182 = vmatprep.subr.bf16.mxu0 0
    %183 = vmatpush1.bf16.msra.mxu0 0
    %184 = vmatprep.subr.bf16.mxu0 0
    %185 = vmatpush1.bf16.msra.mxu0 0
    %186 = vmatprep.subr.bf16.mxu0 0
    %187 = vmatpush1.bf16.msra.mxu0 0
    %188 = vmatprep.subr.bf16.mxu0 0
    %189 = vmatpush1.bf16.msra.mxu0 0
    %190 = vmatprep.subr.bf16.mxu0 0
    %191 = vmatpush1.bf16.msra.mxu0 0
    %192 = vmatprep.subr.bf16.mxu0 0
    %193 = vmatpush1.bf16.msra.mxu0 0
    %194 = vmatprep.subr.bf16.mxu0 0
    %195 = vmatpush1.bf16.msra.mxu0 0
    %196 = vmatprep.subr.bf16.mxu0 0
    %197 = vmatpush1.bf16.msra.mxu0 0
    %198 = vmatprep.subr.bf16.mxu0 0
    %199 = vmatpush1.bf16.msra.mxu0 0
    %200 = vmatprep.subr.bf16.mxu0 0
    %201 = vmatpush1.bf16.msra.mxu0 0
    %202 = vmatprep.subr.bf16.mxu0 0
    %203 = vmatpush1.bf16.msra.mxu0 0
    %204 = vmatprep.subr.bf16.mxu0 0
    %205 = vmatpush1.bf16.msra.mxu0 0
    %206 = vmatprep.mubr.bf16.mxu0 0
    %207 = vmatmul.mubr.bf16.gmra.mrb[0].mxu0 %v172
    %v208 = vpop.f32.mrb[0].mxu0
    %v209 = vadd.f32 %v144, %v208
    %v210 = vpop.f32.mrb[0].mxu0
    %v211 = vpop.f32.mrb[0].mxu0
    %v212 = vpop.f32.mrb[0].mxu0
    %213 = vdwg.mxu0
    %v214 = vmax.f32 %v209, 0.0
    %v215 = vpack.c.bf16 %v214, %v214
    %v216 = vld [vmem:[%s5] sm:$0xf]
    %v217 = vld [vmem:[%s5 + $0x4] sm:$0xf]
    %v218 = vld [vmem:[%s5 + $0x8] sm:$0xf]
    %v219 = vld [vmem:[%s5 + $0xc] sm:$0xf]
    %v220 = vld [vmem:[%s5 + $0x10] sm:$0xf]
    %v221 = vld [vmem:[%s5 + $0x14] sm:$0xf]
    %v222 = vld [vmem:[%s5 + $0x18] sm:$0xf]
    %v223 = vld [vmem:[%s5 + $0x1c] sm:$0xf]
    %v224 = vld [vmem:[%s6] sm:$0x1]
    %v226 = vlaneseq
    %v227 = vshrl.u32 %v226, 7
    %v228 = vsub.s32 0, %v227
    %v229 = vrot.slane %v224, %v228
    %v239 = vunpack.c.l.b16 %v216
    %v240 = vunpack.c.l.b16 %v217
    %v241 = vunpack.c.l.b16 %v218
    %v242 = vunpack.c.l.b16 %v219
    %v243 = vunpack.c.l.b16 %v220
    %v244 = vunpack.c.l.b16 %v221
    %v245 = vunpack.c.l.b16 %v222
    %v246 = vunpack.c.l.b16 %v223
    %v247 = vpack.c.b16 %v240, %v239
    %v248 = vpack.c.b16 %v242, %v241
    %v249 = vpack.c.b16 %v244, %v243
    %v250 = vpack.c.b16 %v246, %v245
    %v256 = vsel %vm170, %v215, 0
    %258 = vmatprep.subr.bf16.mxu0 0
    %259 = vmatpush1.bf16.msra.mxu0 %v247
    %260 = vmatprep.subr.bf16.mxu0 0
    %261 = vmatpush1.bf16.msra.mxu0 %v248
    %262 = vmatprep.subr.bf16.mxu0 0
    %263 = vmatpush1.bf16.msra.mxu0 %v249
    %264 = vmatprep.subr.bf16.mxu0 0
    %265 = vmatpush1.bf16.msra.mxu0 %v250
    %266 = vmatprep.subr.bf16.mxu0 0
    %267 = vmatpush1.bf16.msra.mxu0 0
    %268 = vmatprep.subr.bf16.mxu0 0
    %269 = vmatpush1.bf16.msra.mxu0 0
    %270 = vmatprep.subr.bf16.mxu0 0
    %271 = vmatpush1.bf16.msra.mxu0 0
    %272 = vmatprep.subr.bf16.mxu0 0
    %273 = vmatpush1.bf16.msra.mxu0 0
    %274 = vmatprep.subr.bf16.mxu0 0
    %275 = vmatpush1.bf16.msra.mxu0 0
    %276 = vmatprep.subr.bf16.mxu0 0
    %277 = vmatpush1.bf16.msra.mxu0 0
    %278 = vmatprep.subr.bf16.mxu0 0
    %279 = vmatpush1.bf16.msra.mxu0 0
    %280 = vmatprep.subr.bf16.mxu0 0
    %281 = vmatpush1.bf16.msra.mxu0 0
    %282 = vmatprep.subr.bf16.mxu0 0
    %283 = vmatpush1.bf16.msra.mxu0 0
    %284 = vmatprep.subr.bf16.mxu0 0
    %285 = vmatpush1.bf16.msra.mxu0 0
    %286 = vmatprep.subr.bf16.mxu0 0
    %287 = vmatpush1.bf16.msra.mxu0 0
    %288 = vmatprep.subr.bf16.mxu0 0
    %289 = vmatpush1.bf16.msra.mxu0 0
    %290 = vmatprep.mubr.bf16.mxu0 0
    %291 = vmatmul.mubr.bf16.gmra.mrb[0].mxu0 %v256
    %v292 = vpop.f32.mrb[0].mxu0
    %v293 = vadd.f32 %v229, %v292
    %v294 = vpop.f32.mrb[0].mxu0
    %v295 = vpop.f32.mrb[0].mxu0
    %v296 = vpop.f32.mrb[0].mxu0
    %297 = vdwg.mxu0
    %v298 = vmax.f32 %v293, 0.0
    %v299 = vld [vmem:[%s7] sm:$0xff]
    %v300 = vld [vmem:[%s7 + $0x8] sm:$0xff]
    %v301 = vld [vmem:[%s7 + $0x10] sm:$0xff]
    %v302 = vld [vmem:[%s7 + $0x18] sm:$0xff]
    %v303 = vld [vmem:[%s8] sm:$0x1]
    %v305 = vlaneseq
    %v306 = vshrl.u32 %v305, 7
    %v307 = vsub.s32 0, %v306
    %v308 = vrot.slane %v303, %v307
    %v311 = vsel %vm85, %v298, 0
    %313 = vmatprep.subr.mxu0 0.0
    %314 = vmatpush1.msra.mxu0 %v299
    %315 = vmatprep.subr.mxu0 0.0
    %316 = vmatpush1.msra.mxu0 %v300
    %317 = vmatprep.subr.mxu0 0.0
    %318 = vmatpush1.msra.mxu0 %v301
    %319 = vmatprep.subr.mxu0 0.0
    %320 = vmatpush1.msra.mxu0 %v302
    %321 = vmatprep.subr.mxu0 0.0
    %322 = vmatpush1.msra.mxu0 0.0
    %323 = vmatprep.subr.mxu0 0.0
    %324 = vmatpush1.msra.mxu0 0.0
    %325 = vmatprep.subr.mxu0 0.0
    %326 = vmatpush1.msra.mxu0 0.0
    %327 = vmatprep.subr.mxu0 0.0
    %328 = vmatpush1.msra.mxu0 0.0
    %329 = vmatprep.subr.mxu0 0.0
    %330 = vmatpush1.msra.mxu0 0.0
    %331 = vmatprep.subr.mxu0 0.0
    %332 = vmatpush1.msra.mxu0 0.0
    %333 = vmatprep.subr.mxu0 0.0
    %334 = vmatpush1.msra.mxu0 0.0
    %335 = vmatprep.subr.mxu0 0.0
    %336 = vmatpush1.msra.mxu0 0.0
    %337 = vmatprep.subr.mxu0 0.0
    %338 = vmatpush1.msra.mxu0 0.0
    %339 = vmatprep.subr.mxu0 0.0
    %340 = vmatpush1.msra.mxu0 0.0
    %341 = vmatprep.subr.mxu0 0.0
    %342 = vmatpush1.msra.mxu0 0.0
    %343 = vmatprep.subr.mxu0 0.0
    %344 = vmatpush1.msra.mxu0 0.0
    %345 = vmatprep.subr.mxu0 0.0
    %346 = vmatpush1.msra.mxu0 0.0
    %347 = vmatprep.subr.mxu0 0.0
    %348 = vmatpush1.msra.mxu0 0.0
    %349 = vmatprep.subr.mxu0 0.0
    %350 = vmatpush1.msra.mxu0 0.0
    %351 = vmatprep.subr.mxu0 0.0
    %352 = vmatpush1.msra.mxu0 0.0
    %353 = vmatprep.subr.mxu0 0.0
    %354 = vmatpush1.msra.mxu0 0.0
    %355 = vmatprep.subr.mxu0 0.0
    %356 = vmatpush1.msra.mxu0 0.0
    %357 = vmatprep.subr.mxu0 0.0
    %358 = vmatpush1.msra.mxu0 0.0
    %359 = vmatprep.subr.mxu0 0.0
    %360 = vmatpush1.msra.mxu0 0.0
    %361 = vmatprep.subr.mxu0 0.0
    %362 = vmatpush1.msra.mxu0 0.0
    %363 = vmatprep.subr.mxu0 0.0
    %364 = vmatpush1.msra.mxu0 0.0
    %365 = vmatprep.subr.mxu0 0.0
    %366 = vmatpush1.msra.mxu0 0.0
    %367 = vmatprep.subr.mxu0 0.0
    %368 = vmatpush1.msra.mxu0 0.0
    %369 = vmatprep.subr.mxu0 0.0
    %370 = vmatpush1.msra.mxu0 0.0
    %371 = vmatprep.subr.mxu0 0.0
    %372 = vmatpush1.msra.mxu0 0.0
    %373 = vmatprep.subr.mxu0 0.0
    %374 = vmatpush1.msra.mxu0 0.0
    %375 = vmatprep.subr.mxu0 0.0
    %376 = vmatpush1.msra.mxu0 0.0
    %377 = vmatprep.mubr.f32.mxu0 0.0
    %378 = vmatmul.mubr.f32.gmra.mrb[0].mxu0 %v311
    %v379 = vpop.f32.mrb[0].mxu0
    %v380 = vadd.f32 %v308, %v379
    %v381 = vpop.f32.mrb[0].mxu0
    %382 = vdwg.mxu0
    %v383 = vmul.f32 %v380, 1.442695
    %v384 = vpow.pop %v383
    %385 = vst [vmem:[#allocation7] sm:$0xff] %v384
    // Predicated region
    $region46: #{tpu_custom_call.1} parent=1 // pred_check
      _
    $region47: #{tpu_custom_call.1} parent=1 // pred_check_branch
      %387 = sbr.rel (0) target = $region49
    $region48: #{tpu_custom_call.1} parent=1 // pred_region
      %s389 = ssub.s32 128, 128
      %390 = vsyncadd [#allocation4], %s389
      %s392 = sshll.u32 [#allocation7], 4
      %s393 = int_to_ptr.vmem [resolvable:$true] %s392
      %395 = dma.vmem_to_hbm [thread:$0]  %s393, 128, %s9, [#allocation4]
    $region49: #{tpu_custom_call.1} parent=1 // pred_fallthru
      _
    // Predicated region
    $region50: #{tpu_custom_call.1} parent=1 // pred_check
      _
    $region51: #{tpu_custom_call.1} parent=1 // pred_check_branch
      %397 = sbr.rel (0) target = $region53
    $region52: #{tpu_custom_call.1} parent=1 // pred_region
      %398 = dma.done [#allocation4], 128
    $region53: #{tpu_custom_call.1} parent=1 // pred_fallthru
      _
    %399 = vsyncpa [#allocation3], 1
    %400 = vsyncpa [#allocation6], 1
    %401 = vsyncpa [#allocation4], 1

</llo_original>
